<compile_context>
chip_gen: v6e
topology: v6e:2x2x1
jax: 0.10.0
libtpu: 0.0.40
codegen_flags: <defaults>
</compile_context>

<pallas_src>
import functools

import jax
import jax.numpy as jnp
from jax import lax
from jax.experimental import pallas as pl
from jax.experimental.pallas import tpu as pltpu


def _loss_kernel(logits_ref, labels_ref, dice_ref, ce_ref,
                 inter_acc, sump_acc, cnt_acc, ce_acc, *, rem):
    """Grid = (B, n_tiles).  Views: logits (C, TN), labels (1, TN),
    dice_ref (C, 3) per-batch [inter, sum_p, count], ce_ref (1, 1) per-batch CE sum."""
    t = pl.program_id(1)
    nt = pl.num_programs(1)

    @pl.when(t == 0)
    def _():
        inter_acc[...] = jnp.zeros_like(inter_acc)
        sump_acc[...] = jnp.zeros_like(sump_acc)
        cnt_acc[...] = jnp.zeros_like(cnt_acc)
        ce_acc[...] = jnp.zeros_like(ce_acc)

    def accumulate(masked):
        x = logits_ref[...].astype(jnp.float32)            # (C, TN)
        labels = labels_ref[...]                            # (1, TN) int32
        if masked:
            lane = lax.broadcasted_iota(jnp.int32, labels.shape, 1)
            valid = lane < rem                               # (1, TN) bool
            x = jnp.where(valid, x, 0.0)                     # scrub OOB garbage
            labels = jnp.where(valid, labels, -1)            # -1 never matches a class

        # Softmax over the class (sublane) axis.
        m = jnp.max(x, axis=0, keepdims=True)                # (1, TN)
        e = jnp.exp(x - m)
        s = jnp.sum(e, axis=0, keepdims=True)                # (1, TN)
        # approx reciprocal (EUP) only feeds the Dice sums; CE uses exact log(s).
        p = e * pl.reciprocal(s, approx=True)                # (C, TN)

        cls = lax.broadcasted_iota(jnp.int32, x.shape, 0)
        oh = (cls == labels).astype(jnp.float32)             # (C, TN) one-hot

        if masked:
            vf = valid.astype(jnp.float32)
            p = p * vf

        inter_acc[...] += jnp.sum(p * oh, axis=1, keepdims=True)   # (C, 1)
        sump_acc[...] += jnp.sum(p, axis=1, keepdims=True)         # (C, 1)
        cnt_acc[...] += jnp.sum(oh, axis=1, keepdims=True)         # (C, 1)

        lse = m + jnp.log(s)                                       # (1, TN)
        logit_t = jnp.sum(x * oh, axis=0, keepdims=True)           # (1, TN)
        ce_term = lse - logit_t
        if masked:
            ce_term = ce_term * vf
        ce_acc[...] += jnp.sum(ce_term, axis=1, keepdims=True)

    if rem == 0:
        # tile_n divides H*W: no masking anywhere.
        accumulate(False)
    else:
        @pl.when(t < nt - 1)
        def _():
            accumulate(False)

        @pl.when(t == nt - 1)
        def _():
            accumulate(True)

    @pl.when(t == nt - 1)
    def _():
        # Single (C, 3) store instead of three masked 1-lane stores.
        dice_ref[...] = jnp.concatenate(
            [inter_acc[...], sump_acc[...], cnt_acc[...]], axis=1)
        ce_ref[...] = ce_acc[...]


def _choose_tile_n(hw, c, dtype_bytes, *, max_lanes=16384,
                   vmem_per_buffer=6 * 1024 * 1024):
    """Largest lane tile: multiple of 128, <= hw, <= max_lanes, within a VMEM budget
    (budget is per pipeline buffer; Pallas double-buffers each input)."""
    if hw <= 128:
        return hw  # block == full dim (allowed even if not a multiple of 128)
    bytes_per_lane = c * dtype_bytes + 4  # logits column + int32 label
    cap = max(128, (vmem_per_buffer // bytes_per_lane) // 128 * 128)
    return int(min(max_lanes, cap, (hw // 128) * 128))


def combined_dice_ce_loss(y_pr, y_gt, *, dice_weight=1.0, ce_weight=1.0,
                          eps=1e-6, beta=1.0, activation='softmax', tile_n=None):
    """Pallas implementation of CombinedDiceCrossEntropyLoss.forward."""
    assert activation == 'softmax'  # matches the module default
    B, C, H, W = y_pr.shape
    HW = H * W
    N = B * HW

    # Free reshapes only — no transpose, no pad, no dtype change in HBM.
    logits = y_pr.reshape(B, C, HW)
    labels = y_gt.reshape(B, 1, HW).astype(jnp.int32)

    if tile_n is None:
        tile_n = _choose_tile_n(HW, C, jnp.dtype(y_pr.dtype).itemsize)
    n_tiles = pl.cdiv(HW, tile_n)
    rem = HW % tile_n  # 0 => no tail masking needed

    kernel = functools.partial(_loss_kernel, rem=rem)

    dice_stats, ce_part = pl.pallas_call(
        kernel,
        out_shape=(
            jax.ShapeDtypeStruct((B, C, 3), jnp.float32),   # per-batch [inter, sum_p, cnt]
            jax.ShapeDtypeStruct((B, 1, 1), jnp.float32),   # per-batch CE numerator
        ),
        grid_spec=pltpu.PrefetchScalarGridSpec(
            num_scalar_prefetch=0,
            grid=(B, n_tiles),
            in_specs=[
                pl.BlockSpec((pl.Squeezed(), C, tile_n), lambda b, t: (b, 0, t)),
                pl.BlockSpec((pl.Squeezed(), 1, tile_n), lambda b, t: (b, 0, t)),
            ],
            out_specs=(
                pl.BlockSpec((pl.Squeezed(), C, 3), lambda b, t: (b, 0, 0)),
                pl.BlockSpec((pl.Squeezed(), 1, 1), lambda b, t: (b, 0, 0)),
            ),
            scratch_shapes=[
                pltpu.VMEM((C, 1), jnp.float32),   # intersection per class
                pltpu.VMEM((C, 1), jnp.float32),   # sum of softmax per class
                pltpu.VMEM((C, 1), jnp.float32),   # one-hot counts per class
                pltpu.VMEM((1, 1), jnp.float32),   # CE numerator
            ],
        ),
        compiler_params=pltpu.CompilerParams(
            dimension_semantics=("parallel", "arbitrary"),
            vmem_limit_bytes=32 * 1024 * 1024,
        ),
    )(logits, labels)

    # Tiny epilogue (B*C floats) in plain JAX: combine per-batch partials.
    inter = jnp.sum(dice_stats[:, :, 0], axis=0)
    sump = jnp.sum(dice_stats[:, :, 1], axis=0)
    cnt = jnp.sum(dice_stats[:, :, 2], axis=0)
    fp = sump - inter                       # sum p * (1 - oh)
    fn = cnt - inter                        # sum (1 - p) * oh
    b2 = beta * beta
    num = (1.0 + b2) * inter + eps
    den = (1.0 + b2) * inter + b2 * fn + fp + eps
    dice_loss = 1.0 - jnp.mean(num / den)
    ce_loss = jnp.sum(ce_part) / float(N)
    return dice_weight * dice_loss + ce_weight * ce_loss


def reference_loss(y_pr, y_gt, dice_weight=1.0, ce_weight=1.0, eps=1e-6, beta=1.0):
    """Plain-JAX reference matching the PyTorch module semantics."""
    p = jax.nn.softmax(y_pr, axis=1)
    oh = jax.nn.one_hot(y_gt, y_pr.shape[1], axis=1, dtype=jnp.float32)
    inter = jnp.sum(p * oh, axis=(0, 2, 3))
    fp = jnp.sum(p * (1.0 - oh), axis=(0, 2, 3))
    fn = jnp.sum((1.0 - p) * oh, axis=(0, 2, 3))
    b2 = beta ** 2
    dice = 1.0 - jnp.mean(((1.0 + b2) * inter + eps)
                          / ((1.0 + b2) * inter + b2 * fn + fp + eps))
    logp = jax.nn.log_softmax(y_pr, axis=1)
    ce = -jnp.mean(jnp.sum(logp * oh, axis=1))
    return dice_weight * dice + ce_weight * ce


if __name__ == "__main__":
    key = jax.random.PRNGKey(0)
    k1, k2 = jax.random.split(key)
    B, C, H, W = 2, 4, 16, 16
    y_pr = jax.random.normal(k1, (B, C, H, W), dtype=jnp.float32)
    y_gt = jax.random.randint(k2, (B, H, W), 0, C, dtype=jnp.int32)

    loss_fn = jax.jit(combined_dice_ce_loss)
    loss = jax.block_until_ready(loss_fn(y_pr, y_gt))
    ref = jax.block_until_ready(reference_loss(y_pr, y_gt))

    # Tolerance relaxed slightly vs. exact: the Dice path uses the EUP approximate
    # reciprocal for softmax normalization (CE path stays exact).
    if not jnp.allclose(loss, ref, rtol=1e-3, atol=1e-3):
        raise AssertionError(f"mismatch: pallas={loss} ref={ref}")

    print("KERNEL_OK")
</pallas_src>

<mosaic_0001>
module attributes {stable_mosaic.version = 11 : i64} {
  func.func @_loss_kernel(%arg0: i32, %arg1: i32, %arg2: memref<1x4x256xf32, #tpu.memory_space<vmem>>, %arg3: memref<1x1x256xi32, #tpu.memory_space<vmem>>, %arg4: memref<1x4x3xf32, #tpu.memory_space<vmem>>, %arg5: memref<1x1x1xf32, #tpu.memory_space<vmem>>, %arg6: memref<4x1xf32, #tpu.memory_space<vmem>>, %arg7: memref<4x1xf32, #tpu.memory_space<vmem>>, %arg8: memref<4x1xf32, #tpu.memory_space<vmem>>, %arg9: memref<1x1xf32, #tpu.memory_space<vmem>>) attributes {dimension_semantics = [#tpu.dimension_semantics<parallel>, #tpu.dimension_semantics<arbitrary>], iteration_bounds = array<i64: 2, 1>, scalar_prefetch = 0 : i64, scratch_operands = 4 : i64, tpu.core_type = #tpu.core_type<tc>, window_params = [{transform_indices = @transform_0, window_bounds = array<i64: 1, 4, 256>}, {transform_indices = @transform_1, window_bounds = array<i64: 1, 1, 256>}, {transform_indices = @transform_2, window_bounds = array<i64: 1, 4, 3>}, {transform_indices = @transform_3, window_bounds = array<i64: 1, 1, 1>}]} {
    %c0_i32 = arith.constant 0 : i32
    %0 = arith.cmpi eq, %arg1, %c0_i32 : i32
    %1 = arith.extui %0 : i1 to i32
    %c0_i32_0 = arith.constant 0 : i32
    %2 = arith.cmpi ne, %1, %c0_i32_0 : i32
    scf.if %2 {
      %cst_30 = arith.constant 0.000000e+00 : f32
      %52 = vector.broadcast %cst_30 : f32 to vector<4x1xf32>
      %c0_31 = arith.constant 0 : index
      %c0_32 = arith.constant 0 : index
      %53 = vector.load %arg6[%c0_31, %c0_32] : memref<4x1xf32, #tpu.memory_space<vmem>>, vector<4x1xf32>
      tpu.vector_store %arg6[%c0_31, %c0_32], %52 {strides = array<i32>} : memref<4x1xf32, #tpu.memory_space<vmem>>, vector<4x1xf32>,
      %cst_33 = arith.constant 0.000000e+00 : f32
      %54 = vector.broadcast %cst_33 : f32 to vector<4x1xf32>
      %c0_34 = arith.constant 0 : index
      %c0_35 = arith.constant 0 : index
      %55 = vector.load %arg7[%c0_34, %c0_35] : memref<4x1xf32, #tpu.memory_space<vmem>>, vector<4x1xf32>
      tpu.vector_store %arg7[%c0_34, %c0_35], %54 {strides = array<i32>} : memref<4x1xf32, #tpu.memory_space<vmem>>, vector<4x1xf32>,
      %cst_36 = arith.constant 0.000000e+00 : f32
      %56 = vector.broadcast %cst_36 : f32 to vector<4x1xf32>
      %c0_37 = arith.constant 0 : index
      %c0_38 = arith.constant 0 : index
      %57 = vector.load %arg8[%c0_37, %c0_38] : memref<4x1xf32, #tpu.memory_space<vmem>>, vector<4x1xf32>
      tpu.vector_store %arg8[%c0_37, %c0_38], %56 {strides = array<i32>} : memref<4x1xf32, #tpu.memory_space<vmem>>, vector<4x1xf32>,
      %cst_39 = arith.constant 0.000000e+00 : f32
      %58 = vector.broadcast %cst_39 : f32 to vector<1x1xf32>
      %c0_40 = arith.constant 0 : index
      %c0_41 = arith.constant 0 : index
      %59 = vector.load %arg9[%c0_40, %c0_41] : memref<1x1xf32, #tpu.memory_space<vmem>>, vector<1x1xf32>
      tpu.vector_store %arg9[%c0_40, %c0_41], %58 {strides = array<i32>} : memref<1x1xf32, #tpu.memory_space<vmem>>, vector<1x1xf32>,
    } else {
    }
    %c0 = arith.constant 0 : index
    %c0_1 = arith.constant 0 : index
    %c0_2 = arith.constant 0 : index
    %3 = vector.load %arg2[%c0, %c0_1, %c0_2] : memref<1x4x256xf32, #tpu.memory_space<vmem>>, vector<1x4x256xf32>
    %4 = vector.shape_cast %3 : vector<1x4x256xf32> to vector<4x256xf32>
    %c0_3 = arith.constant 0 : index
    %c0_4 = arith.constant 0 : index
    %c0_5 = arith.constant 0 : index
    %5 = vector.load %arg3[%c0_3, %c0_4, %c0_5] : memref<1x1x256xi32, #tpu.memory_space<vmem>>, vector<1x1x256xi32>
    %6 = vector.shape_cast %5 : vector<1x1x256xi32> to vector<1x256xi32>
    %cst = arith.constant dense<0xFF800000> : vector<256xf32>
    %7 = vector.multi_reduction <maximumf>, %4, %cst [0] : vector<4x256xf32> to vector<256xf32>
    %8 = vector.shape_cast %7 : vector<256xf32> to vector<1x256xf32>
    %9 = vector.broadcast %8 : vector<1x256xf32> to vector<4x256xf32>
    %10 = arith.subf %4, %9 : vector<4x256xf32>
    %11 = math.exp %10 : vector<4x256xf32>
    %cst_6 = arith.constant dense<0.000000e+00> : vector<256xf32>
    %12 = vector.multi_reduction <add>, %11, %cst_6 [0] : vector<4x256xf32> to vector<256xf32>
    %13 = vector.shape_cast %12 : vector<256xf32> to vector<1x256xf32>
    %14 = tpu.reciprocal %13 {approx = true} : vector<1x256xf32> -> vector<1x256xf32>
    %15 = vector.broadcast %14 : vector<1x256xf32> to vector<4x256xf32>
    %16 = arith.mulf %11, %15 : vector<4x256xf32>
    %17 = tpu.iota {dimensions = array<i32: 0>} : vector<4x256xi32>
    %18 = vector.broadcast %6 : vector<1x256xi32> to vector<4x256xi32>
    %19 = arith.cmpi eq, %17, %18 : vector<4x256xi32>
    %20 = arith.extui %19 : vector<4x256xi1> to vector<4x256xi32>
    %21 = arith.sitofp %20 : vector<4x256xi32> to vector<4x256xf32>
    %c0_7 = arith.constant 0 : index
    %c0_8 = arith.constant 0 : index
    %22 = vector.load %arg6[%c0_7, %c0_8] : memref<4x1xf32, #tpu.memory_space<vmem>>, vector<4x1xf32>
    %23 = arith.mulf %16, %21 : vector<4x256xf32>
    %cst_9 = arith.constant dense<0.000000e+00> : vector<4xf32>
    %24 = vector.multi_reduction <add>, %23, %cst_9 [1] : vector<4x256xf32> to vector<4xf32>
    %25 = vector.shape_cast %24 : vector<4xf32> to vector<4x1xf32>
    %26 = arith.addf %22, %25 : vector<4x1xf32>
    %c0_10 = arith.constant 0 : index
    %c0_11 = arith.constant 0 : index
    %27 = vector.load %arg6[%c0_10, %c0_11] : memref<4x1xf32, #tpu.memory_space<vmem>>, vector<4x1xf32>
    tpu.vector_store %arg6[%c0_10, %c0_11], %26 {strides = array<i32>} : memref<4x1xf32, #tpu.memory_space<vmem>>, vector<4x1xf32>,
    %c0_12 = arith.constant 0 : index
    %c0_13 = arith.constant 0 : index
    %28 = vector.load %arg7[%c0_12, %c0_13] : memref<4x1xf32, #tpu.memory_space<vmem>>, vector<4x1xf32>
    %cst_14 = arith.constant dense<0.000000e+00> : vector<4xf32>
    %29 = vector.multi_reduction <add>, %16, %cst_14 [1] : vector<4x256xf32> to vector<4xf32>
    %30 = vector.shape_cast %29 : vector<4xf32> to vector<4x1xf32>
    %31 = arith.addf %28, %30 : vector<4x1xf32>
    %c0_15 = arith.constant 0 : index
    %c0_16 = arith.constant 0 : index
    %32 = vector.load %arg7[%c0_15, %c0_16] : memref<4x1xf32, #tpu.memory_space<vmem>>, vector<4x1xf32>
    tpu.vector_store %arg7[%c0_15, %c0_16], %31 {strides = array<i32>} : memref<4x1xf32, #tpu.memory_space<vmem>>, vector<4x1xf32>,
    %c0_17 = arith.constant 0 : index
    %c0_18 = arith.constant 0 : index
    %33 = vector.load %arg8[%c0_17, %c0_18] : memref<4x1xf32, #tpu.memory_space<vmem>>, vector<4x1xf32>
    %cst_19 = arith.constant dense<0.000000e+00> : vector<4xf32>
    %34 = vector.multi_reduction <add>, %21, %cst_19 [1] : vector<4x256xf32> to vector<4xf32>
    %35 = vector.shape_cast %34 : vector<4xf32> to vector<4x1xf32>
    %36 = arith.addf %33, %35 : vector<4x1xf32>
    %c0_20 = arith.constant 0 : index
    %c0_21 = arith.constant 0 : index
    %37 = vector.load %arg8[%c0_20, %c0_21] : memref<4x1xf32, #tpu.memory_space<vmem>>, vector<4x1xf32>
    tpu.vector_store %arg8[%c0_20, %c0_21], %36 {strides = array<i32>} : memref<4x1xf32, #tpu.memory_space<vmem>>, vector<4x1xf32>,
    %38 = math.log %13 : vector<1x256xf32>
    %39 = arith.addf %8, %38 : vector<1x256xf32>
    %40 = arith.mulf %4, %21 : vector<4x256xf32>
    %cst_22 = arith.constant dense<0.000000e+00> : vector<256xf32>
    %41 = vector.multi_reduction <add>, %40, %cst_22 [0] : vector<4x256xf32> to vector<256xf32>
    %42 = vector.shape_cast %41 : vector<256xf32> to vector<1x256xf32>
    %43 = arith.subf %39, %42 : vector<1x256xf32>
    %c0_23 = arith.constant 0 : index
    %c0_24 = arith.constant 0 : index
    %44 = vector.load %arg9[%c0_23, %c0_24] : memref<1x1xf32, #tpu.memory_space<vmem>>, vector<1x1xf32>
    %cst_25 = arith.constant dense<0.000000e+00> : vector<1xf32>
    %45 = vector.multi_reduction <add>, %43, %cst_25 [1] : vector<1x256xf32> to vector<1xf32>
    %46 = vector.shape_cast %45 : vector<1xf32> to vector<1x1xf32>
    %47 = arith.addf %44, %46 : vector<1x1xf32>
    %c0_26 = arith.constant 0 : index
    %c0_27 = arith.constant 0 : index
    %48 = vector.load %arg9[%c0_26, %c0_27] : memref<1x1xf32, #tpu.memory_space<vmem>>, vector<1x1xf32>
    tpu.vector_store %arg9[%c0_26, %c0_27], %47 {strides = array<i32>} : memref<1x1xf32, #tpu.memory_space<vmem>>, vector<1x1xf32>,
    %c0_i32_28 = arith.constant 0 : i32
    %49 = arith.cmpi eq, %arg1, %c0_i32_28 : i32
    %50 = arith.extui %49 : i1 to i32
    %c0_i32_29 = arith.constant 0 : i32
    %51 = arith.cmpi ne, %50, %c0_i32_29 : i32
    scf.if %51 {
      %c0_30 = arith.constant 0 : index
      %c0_31 = arith.constant 0 : index
      %52 = vector.load %arg6[%c0_30, %c0_31] : memref<4x1xf32, #tpu.memory_space<vmem>>, vector<4x1xf32>
      %c0_32 = arith.constant 0 : index
      %c0_33 = arith.constant 0 : index
      %53 = vector.load %arg7[%c0_32, %c0_33] : memref<4x1xf32, #tpu.memory_space<vmem>>, vector<4x1xf32>
      %c0_34 = arith.constant 0 : index
      %c0_35 = arith.constant 0 : index
      %54 = vector.load %arg8[%c0_34, %c0_35] : memref<4x1xf32, #tpu.memory_space<vmem>>, vector<4x1xf32>
      %55 = tpu.concatenate %52, %53, %54 in 1 : vector<4x1xf32>, vector<4x1xf32>, vector<4x1xf32> -> vector<4x3xf32>
      %c0_36 = arith.constant 0 : index
      %c0_37 = arith.constant 0 : index
      %c0_38 = arith.constant 0 : index
      %56 = vector.load %arg4[%c0_36, %c0_37, %c0_38] : memref<1x4x3xf32, #tpu.memory_space<vmem>>, vector<1x4x3xf32>
      %57 = vector.shape_cast %56 : vector<1x4x3xf32> to vector<4x3xf32>
      %58 = vector.shape_cast %55 : vector<4x3xf32> to vector<1x4x3xf32>
      tpu.vector_store %arg4[%c0_36, %c0_37, %c0_38], %58 {strides = array<i32>} : memref<1x4x3xf32, #tpu.memory_space<vmem>>, vector<1x4x3xf32>,
      %c0_39 = arith.constant 0 : index
      %c0_40 = arith.constant 0 : index
      %59 = vector.load %arg9[%c0_39, %c0_40] : memref<1x1xf32, #tpu.memory_space<vmem>>, vector<1x1xf32>
      %c0_41 = arith.constant 0 : index
      %c0_42 = arith.constant 0 : index
      %c0_43 = arith.constant 0 : index
      %60 = vector.load %arg5[%c0_41, %c0_42, %c0_43] : memref<1x1x1xf32, #tpu.memory_space<vmem>>, vector<1x1x1xf32>
      %61 = vector.shape_cast %60 : vector<1x1x1xf32> to vector<1x1xf32>
      %62 = vector.shape_cast %59 : vector<1x1xf32> to vector<1x1x1xf32>
      tpu.vector_store %arg5[%c0_41, %c0_42, %c0_43], %62 {strides = array<i32>} : memref<1x1x1xf32, #tpu.memory_space<vmem>>, vector<1x1x1xf32>,
    } else {
    }
    return
  }
  func.func @transform_0(%arg0: i32, %arg1: i32) -> (i32, i32, i32) {
    %c0_i32 = arith.constant 0 : i32
    %c0_i32_0 = arith.constant 0 : i32
    return %arg0, %c0_i32, %arg1 : i32, i32, i32
  }
  func.func @transform_1(%arg0: i32, %arg1: i32) -> (i32, i32, i32) {
    %c0_i32 = arith.constant 0 : i32
    %c0_i32_0 = arith.constant 0 : i32
    return %arg0, %c0_i32, %arg1 : i32, i32, i32
  }
  func.func @transform_2(%arg0: i32, %arg1: i32) -> (i32, i32, i32) {
    %c0_i32 = arith.constant 0 : i32
    %c0_i32_0 = arith.constant 0 : i32
    %c0_i32_1 = arith.constant 0 : i32
    return %arg0, %c0_i32, %c0_i32_0 : i32, i32, i32
  }
  func.func @transform_3(%arg0: i32, %arg1: i32) -> (i32, i32, i32) {
    %c0_i32 = arith.constant 0 : i32
    %c0_i32_0 = arith.constant 0 : i32
    %c0_i32_1 = arith.constant 0 : i32
    return %arg0, %c0_i32, %c0_i32_0 : i32, i32, i32
  }
}

</mosaic_0001>

<llo_original>
// kernel: combined_dice_ce_loss.1
$region0: #{combined_dice_ce_loss.1}
  #allocation0 [shape = 'u32[]', space=smem, size = 0x4, offset = 0x4, fixed_abs, tag = 'smem constant byte address 0x4 - core index']
  #allocation1 [shape = 'u32[144,128]{1,0:T(1,128)}', space=vmem, size = 0x12000, scoped, tag = 'internal scratch']
  #allocation2 [shape = 'f32[4,1]{1,0:T(4,128)}', space=vmem, size = 0x800, scoped, tag = 'scratch operand']
  #allocation3 [shape = 'f32[4,1]{1,0:T(4,128)}', space=vmem, size = 0x800, scoped, tag = 'scratch operand']
  #allocation4 [shape = 'f32[4,1]{1,0:T(4,128)}', space=vmem, size = 0x800, scoped, tag = 'scratch operand']
  #allocation5 [shape = 'f32[1,1]{1,0:T(1,128)}', space=vmem, size = 0x200, scoped, tag = 'scratch operand']
  %s0 = inlined_call_operand.vmem [shape: f32[2,4,256], index: 0, kind: input, shape index: {}]
  %s1 = inlined_call_operand.vmem [shape: s32[2,1,256], index: 1, kind: input, shape index: {}]
  %s2 = inlined_call_operand.vmem [shape: f32[2,4,3], index: 2, kind: output, shape index: {0}]
  %s3 = inlined_call_operand.vmem [shape: f32[2,1,1], index: 3, kind: output, shape index: {1}]
  %4 = xla_tuple %s2, %s3
  %s5 = sld [smem:[#allocation0]]
  $region57: #{combined_dice_ce_loss.1} parent=0
    _
  %s7 = ssub.s32 1, %s5
  %s8 = scalar_select 0, %s7, %s5
  loop: start=0, step=1, limit=4
  $region2: #{combined_dice_ce_loss.1} parent=0 // loop_pre_header
    _
  $region3: #{combined_dice_ce_loss.1} parent=0 // loop_header
    %s10 = sphi 0, %s14
    %p11 = scmp.ge.s32.totalorder %s10, 4
    %s17 = sphi 0, %s29
    %s18 = sphi 0, %s25
    %s19 = sphi 0, %s17
    %s20 = sphi 0, %s18
    %s21 = sphi 0, %s19
    %s22 = sphi 0, %s20
    %s34 = sphi 0, %s36
    %s37 = sphi 0, %s34
    %s38 = sphi 0, %s37
    %s54 = sphi 0, %s38
    %s62 = sphi 0, %s64
    %s65 = sphi 0, %s62
    %s66 = sphi 0, %s65
    %s82 = sphi 0, %s66
    %s88 = sphi 0, %s90
    %s91 = sphi 0, %s88
    %s92 = sphi 0, %s91
    %s108 = sphi 0, %s92
    %s114 = sphi 0, %s116
    %s117 = sphi 0, %s114
    %s118 = sphi 0, %s117
    %s134 = sphi 0, %s118
  $region4: #{combined_dice_ce_loss.1} parent=0 // loop_header_branch
    %13 = sbr.rel (%p11) target = $region8
  $region5: #{combined_dice_ce_loss.1} parent=0 // loop_body
    %s15 = ssub.s32 %s10, 1
    %s16 = ssub.s32 %s10, 2
    %s23 = sadd.s32 1, %s18
    %p24 = scmp.ge.s32.totalorder %s23, 1
    %s25 = scalar_select %p24, 0, %s23
    %s26 = sadd.s32 1, %s17
    %s27 = scalar_select %p24, %s26, %s17
    %p28 = scmp.ge.s32.totalorder %s27, 2
    %s29 = scalar_select %p28, 0, %s27
    %s30 = ssub.s32 %s17, %s29
    %s31 = ssub.s32 %s18, %s25
    %s32 = sor.u32 %s30, %s31
    %p33 = scmp.eq.s32.totalorder %s32, 0
    %s35 = sadd.s32 %s34, 1
    %s36 = scalar_select %p33, %s34, %s35
    %p39 = pneg %p33
    %p40 = scmp.eq.s32.totalorder %s10, 1
    %p41 = por %p39, %p40
    %p42 = scmp.ne.s32.totalorder %s34, %s37
    %p43 = scmp.eq.s32.totalorder %s10, 0
    %p44 = por %p42, %p43
    %p45 = scmp.ne.s32.totalorder %s34, %s37
    %p46 = scmp.eq.s32.totalorder %s15, 1
    %p47 = por %p45, %p46
    %p48 = scmp.ne.s32.totalorder %s37, %s38
    %p49 = scmp.eq.s32.totalorder %s15, 0
    %p50 = por %p48, %p49
    %p51 = scmp.ne.s32.totalorder %s37, %s38
    %p52 = scmp.eq.s32.totalorder %s16, 1
    %p53 = por %p51, %p52
    %p55 = scmp.ne.s32.totalorder %s38, %s54
    %p56 = scmp.eq.s32.totalorder %s16, 0
    %p57 = por %p55, %p56
    %s58 = ssub.s32 %s17, %s29
    %s59 = ssub.s32 %s18, %s25
    %s60 = sor.u32 %s58, %s59
    %p61 = scmp.eq.s32.totalorder %s60, 0
    %s63 = sadd.s32 %s62, 1
    %s64 = scalar_select %p61, %s62, %s63
    %p67 = pneg %p61
    %p68 = scmp.eq.s32.totalorder %s10, 1
    %p69 = por %p67, %p68
    %p70 = scmp.ne.s32.totalorder %s62, %s65
    %p71 = scmp.eq.s32.totalorder %s10, 0
    %p72 = por %p70, %p71
    %p73 = scmp.ne.s32.totalorder %s62, %s65
    %p74 = scmp.eq.s32.totalorder %s15, 1
    %p75 = por %p73, %p74
    %p76 = scmp.ne.s32.totalorder %s65, %s66
    %p77 = scmp.eq.s32.totalorder %s15, 0
    %p78 = por %p76, %p77
    %p79 = scmp.ne.s32.totalorder %s65, %s66
    %p80 = scmp.eq.s32.totalorder %s16, 1
    %p81 = por %p79, %p80
    %p83 = scmp.ne.s32.totalorder %s66, %s82
    %p84 = scmp.eq.s32.totalorder %s16, 0
    %p85 = por %p83, %p84
    %s86 = ssub.s32 %s17, %s29
    %p87 = scmp.eq.s32.totalorder %s86, 0
    %s89 = sadd.s32 %s88, 1
    %s90 = scalar_select %p87, %s88, %s89
    %p93 = pneg %p87
    %p94 = scmp.eq.s32.totalorder %s10, 1
    %p95 = por %p93, %p94
    %p96 = scmp.ne.s32.totalorder %s88, %s91
    %p97 = scmp.eq.s32.totalorder %s10, 0
    %p98 = por %p96, %p97
    %p99 = scmp.ne.s32.totalorder %s88, %s91
    %p100 = scmp.eq.s32.totalorder %s15, 1
    %p101 = por %p99, %p100
    %p102 = scmp.ne.s32.totalorder %s91, %s92
    %p103 = scmp.eq.s32.totalorder %s15, 0
    %p104 = por %p102, %p103
    %p105 = scmp.ne.s32.totalorder %s91, %s92
    %p106 = scmp.eq.s32.totalorder %s16, 1
    %p107 = por %p105, %p106
    %p109 = scmp.ne.s32.totalorder %s92, %s108
    %p110 = scmp.eq.s32.totalorder %s16, 0
    %p111 = por %p109, %p110
    %s112 = ssub.s32 %s17, %s29
    %p113 = scmp.eq.s32.totalorder %s112, 0
    %s115 = sadd.s32 %s114, 1
    %s116 = scalar_select %p113, %s114, %s115
    %p119 = pneg %p113
    %p120 = scmp.eq.s32.totalorder %s10, 1
    %p121 = por %p119, %p120
    %p122 = scmp.ne.s32.totalorder %s114, %s117
    %p123 = scmp.eq.s32.totalorder %s10, 0
    %p124 = por %p122, %p123
    %p125 = scmp.ne.s32.totalorder %s114, %s117
    %p126 = scmp.eq.s32.totalorder %s15, 1
    %p127 = por %p125, %p126
    %p128 = scmp.ne.s32.totalorder %s117, %s118
    %p129 = scmp.eq.s32.totalorder %s15, 0
    %p130 = por %p128, %p129
    %p131 = scmp.ne.s32.totalorder %s117, %s118
    %p132 = scmp.eq.s32.totalorder %s16, 1
    %p133 = por %p131, %p132
    %p135 = scmp.ne.s32.totalorder %s118, %s134
    %p136 = scmp.eq.s32.totalorder %s16, 0
    %p137 = por %p135, %p136
    %p138 = scmp.le.s32.totalorder 1, %s10
    %p139 = scmp.lt.s32.totalorder %s10, 3
    %p140 = pnand %p138, %p139
    %p141 = pneg %p140
    // Predicated region
    $region9: #{combined_dice_ce_loss.1} parent=5 // pred_check
      _
    $region10: #{combined_dice_ce_loss.1} parent=5 // pred_check_branch
      %143 = sbr.rel (%p140) target = $region12
    $region11: #{combined_dice_ce_loss.1} parent=5 // pred_region
      %s144 = ssub.s32 %s10, 1
    $region12: #{combined_dice_ce_loss.1} parent=5 // pred_fallthru
      _
    %p145 = scmp.lt.s32.totalorder %s10, 2
    // Predicated region
    $region13: #{combined_dice_ce_loss.1} parent=5 // pred_check
      %p146 = pneg %p145
    $region14: #{combined_dice_ce_loss.1} parent=5 // pred_check_branch
      %148 = sbr.rel (%p146) target = $region16
    $region15: #{combined_dice_ce_loss.1} parent=5 // pred_region
      // Predicated region
      $region17: #{combined_dice_ce_loss.1} parent=15 // pred_check
        %p149 = pneg %p44
      $region18: #{combined_dice_ce_loss.1} parent=15 // pred_check_branch
        %151 = sbr.rel (%p149) target = $region20
      $region19: #{combined_dice_ce_loss.1} parent=15 // pred_region
        %s152 = smul.u32 2, %s18
        %p153 = scmp.lt.s32.totalorder %s17, 1
        %s154 = scalar_select %p153, %s17, 1
        %p155 = scmp.lt.s32.totalorder %s152, 1
        %s156 = scalar_select %p155, %s152, 1
        %s157 = smul.addr %s154, 2
        %s158 = sadd.s32 %s156, %s157
        %s159 = smul.addr %s158, 4
        %s160 = scalar_lea.vmem %s0, %s159
        %s161 = smul.u32 2, %s18
      $region20: #{combined_dice_ce_loss.1} parent=15 // pred_fallthru
        _
      // Predicated region
      $region21: #{combined_dice_ce_loss.1} parent=15 // pred_check
        %p162 = pneg %p72
      $region22: #{combined_dice_ce_loss.1} parent=15 // pred_check_branch
        %164 = sbr.rel (%p162) target = $region24
      $region23: #{combined_dice_ce_loss.1} parent=15 // pred_region
        %s165 = smul.u32 2, %s18
        %p166 = scmp.lt.s32.totalorder %s17, 1
        %s167 = scalar_select %p166, %s17, 1
        %p168 = scmp.lt.s32.totalorder %s165, 1
        %s169 = scalar_select %p168, %s165, 1
        %s170 = smul.addr %s167, 2
        %s171 = sadd.s32 %s169, %s170
        %s172 = scalar_lea.vmem %s1, %s171
        %s173 = smul.u32 2, %s18
      $region24: #{combined_dice_ce_loss.1} parent=15 // pred_fallthru
        _
    $region16: #{combined_dice_ce_loss.1} parent=5 // pred_fallthru
      _
    %p174 = scmp.le.s32.totalorder 1, %s10
    %p175 = scmp.lt.s32.totalorder %s10, 3
    %p176 = pnand %p174, %p175
    %p177 = pneg %p176
    // Predicated region
    $region25: #{combined_dice_ce_loss.1} parent=5 // pred_check
      _
    $region26: #{combined_dice_ce_loss.1} parent=5 // pred_check_branch
      %179 = sbr.rel (%p176) target = $region28
    $region27: #{combined_dice_ce_loss.1} parent=5 // pred_region
      %s180 = ssub.s32 %s10, 1
      %s181 = smul.u32 2, %s20
      %p182 = scmp.lt.s32.totalorder %s19, 1
      %s183 = scalar_select %p182, %s19, 1
      %p184 = scmp.lt.s32.totalorder %s181, 1
      %s185 = scalar_select %p184, %s181, 1
      %s186 = smul.addr %s183, 2
      %s187 = sadd.s32 %s185, %s186
      %s188 = smul.addr %s187, 4
      %s189 = scalar_lea.vmem %s0, %s188
      %p190 = pneg %p50
      %p191 = pneg %p47
      %s192 = smul.u32 2, %s20
      %p193 = scmp.lt.s32.totalorder %s19, 1
      %s194 = scalar_select %p193, %s19, 1
      %p195 = scmp.lt.s32.totalorder %s192, 1
      %s196 = scalar_select %p195, %s192, 1
      %s197 = smul.addr %s194, 2
      %s198 = sadd.s32 %s196, %s197
      %s199 = scalar_lea.vmem %s1, %s198
      %p200 = pneg %p78
      %p201 = pneg %p75
      %p202 = pneg %p104
      %p203 = pneg %p101
      %p204 = scmp.lt.s32.totalorder %s19, 1
      %s205 = scalar_select %p204, %s19, 1
      %s206 = smul.addr %s205, 4
      %s207 = scalar_lea.vmem %s2, %s206
      %p208 = pneg %p130
      %p209 = pneg %p127
      %p210 = scmp.lt.s32.totalorder %s19, 1
      %s211 = scalar_select %p210, %s19, 1
      %s212 = scalar_lea.vmem %s3, %s211
      %s213 = smul.u32 2, %s20
      %p214 = scmp.lt.s32.totalorder %s19, 1
      %s215 = scalar_select %p214, %s19, 1
      %p216 = scmp.lt.s32.totalorder %s213, 1
      %s217 = scalar_select %p216, %s213, 1
      %s218 = smul.addr %s215, 2
      %s219 = sadd.s32 %s217, %s218
      %s220 = smul.addr %s219, 4
      %s221 = scalar_lea.vmem %s0, %s220
      %s222 = smul.u32 2, %s20
      %s223 = smul.u32 2, %s20
      %p224 = scmp.lt.s32.totalorder %s19, 1
      %s225 = scalar_select %p224, %s19, 1
      %p226 = scmp.lt.s32.totalorder %s223, 1
      %s227 = scalar_select %p226, %s223, 1
      %s228 = smul.addr %s225, 2
      %s229 = sadd.s32 %s227, %s228
      %s230 = scalar_lea.vmem %s1, %s229
      %s231 = smul.u32 2, %s20
      %p232 = scmp.lt.s32.totalorder %s19, 1
      %s233 = scalar_select %p232, %s19, 1
      %s234 = smul.addr %s233, 4
      %s235 = scalar_lea.vmem %s2, %s234
      %p236 = scmp.lt.s32.totalorder %s19, 1
      %s237 = scalar_select %p236, %s19, 1
      %s238 = scalar_lea.vmem %s3, %s237
      %p239 = scmp.eq.s32.totalorder %s20, 0
      // Predicated region
      $region29: #{combined_dice_ce_loss.1} parent=27 // pred_check
        %p240 = pneg %p239
      $region30: #{combined_dice_ce_loss.1} parent=27 // pred_check_branch
        %242 = sbr.rel (%p240) target = $region32
      $region31: #{combined_dice_ce_loss.1} parent=27 // pred_region
        %vm243 = vcmask 3072
        %244 = vst.msk [vmem:[#allocation2] sm:$0xf] %vm243, 0.0
        %245 = vst.msk [vmem:[#allocation3] sm:$0xf] %vm243, 0.0
        %246 = vst.msk [vmem:[#allocation4] sm:$0xf] %vm243, 0.0
        %vm247 = vcmask 0
        %248 = vst.msk [vmem:[#allocation5] sm:$0x1] %vm247, 0.0
      $region32: #{combined_dice_ce_loss.1} parent=27 // pred_fallthru
        _
      %v249 = vld [vmem:[%s221] sm:$0xff]
      %v250 = vld [vmem:[%s230] sm:$0x3]
      %v252 = vcombine.high %v249, %v249
      %vm254 = vcmask 1043456
      %v255 = vsel %vm254, %v249, -inf
      %v256 = vrot.slane %v255, 4
      %v257 = vmax.f32 %v255, %v256
      %v258 = vrot.slane %v257, 2
      %v259 = vmax.f32 %v257, %v258
      %v260 = vrot.slane %v259, 1
      %v261 = vmax.f32 %v259, %v260
      %v262 = vsel %vm254, %v252, -inf
      %v263 = vrot.slane %v262, 4
      %v264 = vmax.f32 %v262, %v263
      %v265 = vrot.slane %v264, 2
      %v266 = vmax.f32 %v264, %v265
      %v267 = vrot.slane %v266, 1
      %v268 = vmax.f32 %v266, %v267
      %v271 = vcombine.low %v261, %v268
      %v273 = vsub.f32 %v249, %v271
      %v274 = vmul.f32 %v273, 1.442695
      %v275 = vpow.pop %v274
      %v277 = vcombine.high %v275, %v275
      %v279 = vsel %vm254, %v275, 0.0
      %v280 = vrot.slane %v279, 4
      %v281 = vadd.f32 %v279, %v280
      %v282 = vrot.slane %v281, 2
      %v283 = vadd.f32 %v281, %v282
      %v284 = vrot.slane %v283, 1
      %v285 = vadd.f32 %v283, %v284
      %v286 = vsel %vm254, %v277, 0.0
      %v287 = vrot.slane %v286, 4
      %v288 = vadd.f32 %v286, %v287
      %v289 = vrot.slane %v288, 2
      %v290 = vadd.f32 %v288, %v289
      %v291 = vrot.slane %v290, 1
      %v292 = vadd.f32 %v290, %v291
      %v293 = vrcp.pop %v285
      %v294 = vrcp.pop %v292
      %v297 = vcombine.low %v293, %v294
      %v299 = vmul.f32 %v275, %v297
      %v300 = vlaneseq
      %v301 = vshrl.u32 %v300, 7
      %v302 = vlaneseq
      %v303 = vshrl.u32 %v302, 7
      %v304 = vsub.s32 0, %v303
      %v305 = vrot.slane %v250, %v304
      %v306 = vlaneseq
      %v307 = vshrl.u32 %v306, 7
      %v308 = vsub.s32 1, %v307
      %v309 = vrot.slane %v250, %v308
      %vm310 = vcmp.eq.s32.totalorder %v301, %v305
      %vm311 = vcmp.eq.s32.totalorder %v301, %v309
      %v312 = vsel %vm310, 1, 0
      %v313 = vsel %vm311, 1, 0
      %v314 = vcvt.s32.f32 %v312
      %v315 = vcvt.s32.f32 %v313
      %v316 = vld [vmem:[#allocation2] sm:$0xf]
      %v319 = vcombine.low %v314, %v315
      %v321 = vmul.f32 %v299, %v319
      %v323 = vcombine.high %v321, %v321
      %v325 = vsel %vm254, %v321, 0.0
      %v326 = vsel %vm254, %v323, 0.0
      %v327 = vadd.f32 %v325, %v326
      %328 = vadd.xlane.f32.xlu0 %v327
      %v329 = vpop.xlane.xlu0 %328
      %v330 = vadd.f32 %v316, %v329
      %vm331 = vcmask 3072
      %332 = vst.msk [vmem:[#allocation2] sm:$0xf] %vm331, %v330
      %v333 = vld [vmem:[#allocation3] sm:$0xf]
      %v335 = vcombine.high %v299, %v299
      %v337 = vsel %vm254, %v299, 0.0
      %v338 = vsel %vm254, %v335, 0.0
      %v339 = vadd.f32 %v337, %v338
      %340 = vadd.xlane.f32.xlu0 %v339
      %v341 = vpop.xlane.xlu0 %340
      %v342 = vadd.f32 %v333, %v341
      %343 = vst.msk [vmem:[#allocation3] sm:$0xf] %vm331, %v342
      %v344 = vld [vmem:[#allocation4] sm:$0xf]
      %v345 = vsel %vm254, %v314, 0.0
      %v346 = vsel %vm254, %v315, 0.0
      %v347 = vadd.f32 %v345, %v346
      %348 = vadd.xlane.f32.xlu0 %v347
      %v349 = vpop.xlane.xlu0 %348
      %v350 = vadd.f32 %v344, %v349
      %351 = vst.msk [vmem:[#allocation4] sm:$0xf] %vm331, %v350
      %v352 = vlog2.pop %v285
      %v353 = vmul.f32 %v352, 0.6931472
      %v354 = vlog2.pop %v292
      %v355 = vmul.f32 %v354, 0.6931472
      %v356 = vadd.f32 %v261, %v353
      %v357 = vadd.f32 %v268, %v355
      %v358 = vmul.f32 %v249, %v319
      %v360 = vcombine.high %v358, %v358
      %v362 = vsel %vm254, %v358, 0.0
      %v363 = vrot.slane %v362, 4
      %v364 = vadd.f32 %v362, %v363
      %v365 = vrot.slane %v364, 2
      %v366 = vadd.f32 %v364, %v365
      %v367 = vrot.slane %v366, 1
      %v368 = vadd.f32 %v366, %v367
      %v369 = vsel %vm254, %v360, 0.0
      %v370 = vrot.slane %v369, 4
      %v371 = vadd.f32 %v369, %v370
      %v372 = vrot.slane %v371, 2
      %v373 = vadd.f32 %v371, %v372
      %v374 = vrot.slane %v373, 1
      %v375 = vadd.f32 %v373, %v374
      %v376 = vsub.f32 %v356, %v368
      %v377 = vsub.f32 %v357, %v375
      %v378 = vld [vmem:[#allocation5] sm:$0x1]
      %v379 = vadd.f32 %v376, %v377
      %380 = vadd.xlane.f32.xlu0 %v379
      %v381 = vpop.xlane.xlu0 %380
      %v382 = vadd.f32 %v378, %v381
      %vm383 = vcmask 0
      %384 = vst.msk [vmem:[#allocation5] sm:$0x1] %vm383, %v382
      // Predicated region
      $region33: #{combined_dice_ce_loss.1} parent=27 // pred_check
        %p385 = pneg %p239
      $region34: #{combined_dice_ce_loss.1} parent=27 // pred_check_branch
        %387 = sbr.rel (%p385) target = $region36
      $region35: #{combined_dice_ce_loss.1} parent=27 // pred_region
        %v388 = vld [vmem:[#allocation2] sm:$0xf]
        %v389 = vld [vmem:[#allocation3] sm:$0xf]
        %v390 = vld [vmem:[#allocation4] sm:$0xf]
        %392 = vrot.lane.b32.xlu0 %v389, 1
        %v393 = vpop.permute.xlu0 %392
        %396 = vrot.lane.b32.xlu0 %v390, 2
        %v397 = vpop.permute.xlu0 %396
        %vm399 = vcmask 7168
        %v400 = vsel %vm399, %v388, %v393
        %vm401 = vcmask 15360
        %v402 = vsel %vm401, %v400, %v397
        %vm403 = vcmask 19456
        %404 = vst.msk [vmem:[%s235] sm:$0xf] %vm403, %v402
        %v405 = vld [vmem:[#allocation5] sm:$0x1]
        %406 = vst.msk [vmem:[%s238] sm:$0x1] %vm383, %v405
      $region36: #{combined_dice_ce_loss.1} parent=27 // pred_fallthru
        _
      %p407 = scmp.lt.s32.totalorder %s19, 1
      %s408 = scalar_select %p407, %s19, 1
      %s409 = smul.addr %s408, 4
      %s410 = scalar_lea.vmem %s2, %s409
      %p411 = scmp.lt.s32.totalorder %s19, 1
      %s412 = scalar_select %p411, %s19, 1
      %s413 = scalar_lea.vmem %s3, %s412
      // Predicated region
      $region37: #{combined_dice_ce_loss.1} parent=27 // pred_check
        %p414 = pneg %p101
      $region38: #{combined_dice_ce_loss.1} parent=27 // pred_check_branch
        %416 = sbr.rel (%p414) target = $region40
      $region39: #{combined_dice_ce_loss.1} parent=27 // pred_region
        _
      $region40: #{combined_dice_ce_loss.1} parent=27 // pred_fallthru
        _
      // Predicated region
      $region41: #{combined_dice_ce_loss.1} parent=27 // pred_check
        %p417 = pneg %p127
      $region42: #{combined_dice_ce_loss.1} parent=27 // pred_check_branch
        %419 = sbr.rel (%p417) target = $region44
      $region43: #{combined_dice_ce_loss.1} parent=27 // pred_region
        _
      $region44: #{combined_dice_ce_loss.1} parent=27 // pred_fallthru
        _
    $region28: #{combined_dice_ce_loss.1} parent=5 // pred_fallthru
      _
    %p420 = scmp.le.s32.totalorder 2, %s10
    // Predicated region
    $region45: #{combined_dice_ce_loss.1} parent=5 // pred_check
      %p421 = pneg %p420
    $region46: #{combined_dice_ce_loss.1} parent=5 // pred_check_branch
      %423 = sbr.rel (%p421) target = $region48
    $region47: #{combined_dice_ce_loss.1} parent=5 // pred_region
      %s424 = ssub.s32 %s10, 2
      // Predicated region
      $region49: #{combined_dice_ce_loss.1} parent=47 // pred_check
        %p425 = pneg %p107
      $region50: #{combined_dice_ce_loss.1} parent=47 // pred_check_branch
        %427 = sbr.rel (%p425) target = $region52
      $region51: #{combined_dice_ce_loss.1} parent=47 // pred_region
        %p428 = scmp.lt.s32.totalorder %s21, 1
        %s429 = scalar_select %p428, %s21, 1
        %s430 = smul.addr %s429, 4
        %s431 = scalar_lea.vmem %s2, %s430
      $region52: #{combined_dice_ce_loss.1} parent=47 // pred_fallthru
        _
      // Predicated region
      $region53: #{combined_dice_ce_loss.1} parent=47 // pred_check
        %p432 = pneg %p133
      $region54: #{combined_dice_ce_loss.1} parent=47 // pred_check_branch
        %434 = sbr.rel (%p432) target = $region56
      $region55: #{combined_dice_ce_loss.1} parent=47 // pred_region
        %p435 = scmp.lt.s32.totalorder %s21, 1
        %s436 = scalar_select %p435, %s21, 1
        %s437 = scalar_lea.vmem %s3, %s436
      $region56: #{combined_dice_ce_loss.1} parent=47 // pred_fallthru
        _
    $region48: #{combined_dice_ce_loss.1} parent=5 // pred_fallthru
      _
  $region6: #{combined_dice_ce_loss.1} parent=0 // loop_footer
    %s14 = sadd.s32 1, %s10
  $region7: #{combined_dice_ce_loss.1} parent=0 // loop_footer_branch
    %9 = sbr.rel target = $region3
  $region8: #{combined_dice_ce_loss.1} parent=0 // loop_exit
    _

</llo_original>
